<compile_context>
chip_gen: v7x
topology: tpu7x:2x2x1
jax: 0.10.0
libtpu: 0.0.40
codegen_flags: <defaults>
</compile_context>

<pallas_src>
import functools

import jax
import jax.numpy as jnp
import numpy as np
from jax.experimental import pallas as pl
from jax.experimental.pallas import tpu as pltpu


# ---------------------------------------------------------------------------
# Host-side constant construction (numpy, cached).
# ---------------------------------------------------------------------------
def _bilinear_matrix_np(out_size: int, in_size: int) -> np.ndarray:
    """Interp matrix M (out, in) s.t. y = M @ x matches torch
    nn.Upsample(mode='bilinear', align_corners=False) along one axis."""
    o = np.arange(out_size, dtype=np.float64)
    src = (o + 0.5) * (in_size / out_size) - 0.5
    src = np.maximum(src, 0.0)                    # torch clamps source index at 0
    i0 = np.clip(np.floor(src).astype(np.int64), 0, in_size - 1)
    i1 = np.minimum(i0 + 1, in_size - 1)
    w1 = src - i0
    w0 = 1.0 - w1
    m = np.zeros((out_size, in_size), dtype=np.float64)
    rows = np.arange(out_size)
    np.add.at(m, (rows, i0), w0)
    np.add.at(m, (rows, i1), w1)
    return m


@functools.lru_cache(maxsize=None)
def _patch_upsample_matrix(h: int, w: int, osize: int) -> np.ndarray:
    """Dense operand M2d (H*W, 4*O*O) such that
         (x.reshape(C, H*W) @ M2d)[c, q*O*O + r*O + s]
           == bilinear_upsample(quadrant_q(x[c]), (O, O))[r, s]
    with quadrant order TL, TR, BL, BR (== patchify(x, 2) order)."""
    a = _bilinear_matrix_np(osize, h // 2)        # row interp (O, H/2)
    b = _bilinear_matrix_np(osize, w // 2)        # col interp (O, W/2)
    hh, hw = h // 2, w // 2
    oo = osize * osize
    # kron(a.T, b.T)[(hp*hw + wp), (r*O + s)] = a[r, hp] * b[s, wp]
    ksub = np.kron(a.T, b.T).reshape(hh, hw, oo)
    m = np.zeros((h, w, 4, oo), dtype=np.float64)
    for q, (hr, wc) in enumerate(((0, 0), (0, hw), (hh, 0), (hh, hw))):
        m[hr:hr + hh, wc:wc + hw, q, :] = ksub
    return np.ascontiguousarray(m.reshape(h * w, 4 * oo)).astype(np.float32)


# ---------------------------------------------------------------------------
# Pallas kernel.
# ---------------------------------------------------------------------------
def _multi_scales_kernel(xflat_ref, m2d_ref, out_ref, patches_ref):
    # xflat_ref  : (Cb, H*W)      channel block of the flattened image
    # m2d_ref    : (H*W, 4*O*O)   fused patchify + bilinear operand (constant)
    # out_ref    : (1, Cb, O*O)   one output slot, lane-dense
    # patches_ref: (4, Cb, O*O)   VMEM scratch, carried along the slot axis
    slot = pl.program_id(1)
    oo = out_ref.shape[-1]

    @pl.when(slot == 0)
    def _():
        xf = xflat_ref[...].astype(jnp.float32)
        # ONE MXU matmul: every upsampled quadrant of every channel in the block.
        allq = jnp.dot(xf, m2d_ref[...], preferred_element_type=jnp.float32)
        for q in range(4):                        # static, 128-aligned lane slices
            patches_ref[q] = allq[:, q * oo:(q + 1) * oo]
        out_ref[0] = xf                           # slot 0: the original image

    @pl.when(slot > 0)
    def _():
        # Slots 1 + 4*d + q all replicate quadrant q: the module always
        # patchifies with dimension=2, so every division yields the same set.
        q = (slot - 1) % 4
        out_ref[0] = patches_ref[q]


def multi_scales_forward(x: jnp.ndarray, divisions, *, channel_block=None):
    """Pallas implementation of MultiScales(divisions).forward(x)."""
    c, h, w = x.shape
    assert h == w, "MultiScales implicitly requires H == W (torch.stack of x with (W,W) patches)"
    assert h % 2 == 0 and w % 2 == 0, "spatial dims must be divisible by 2"
    osize = w                                     # torch: x.size()[-1]
    oo = osize * osize
    n_out = 1 + 4 * len(divisions)

    if channel_block is None:
        channel_block = c                         # split into blocks of >=8 at large C
    assert c % channel_block == 0
    n_cblk = c // channel_block

    m2d = jnp.asarray(_patch_upsample_matrix(h, w, osize))
    xflat = x.reshape(c, h * w)                   # wrapper-side layout plumbing (free)

    out_flat = pl.pallas_call(
        _multi_scales_kernel,
        out_shape=jax.ShapeDtypeStruct((n_out, c, oo), jnp.float32),
        grid=(n_cblk, n_out),
        in_specs=[
            pl.BlockSpec((channel_block, h * w), lambda cb, i: (cb, 0)),
            pl.BlockSpec((h * w, 4 * oo), lambda cb, i: (0, 0)),
        ],
        out_specs=pl.BlockSpec((1, channel_block, oo), lambda cb, i: (i, cb, 0)),
        scratch_shapes=[pltpu.VMEM((4, channel_block, oo), jnp.float32)],
        compiler_params=pltpu.CompilerParams(
            dimension_semantics=("parallel", "arbitrary")),
    )(xflat, m2d)

    return out_flat.reshape(n_out, c, osize, osize)


# ---------------------------------------------------------------------------
# Independent (gather-based) reference of the module's math, for verification.
# ---------------------------------------------------------------------------
def _upsample_bilinear_ref(p: jnp.ndarray, osize: int) -> jnp.ndarray:
    """torch nn.Upsample(size=(osize,osize), mode='bilinear', align_corners=False)."""
    c, h, w = p.shape

    def src_idx(out_size, in_size):
        s = (jnp.arange(out_size, dtype=jnp.float32) + 0.5) * (in_size / out_size) - 0.5
        s = jnp.maximum(s, 0.0)
        i0 = jnp.clip(jnp.floor(s).astype(jnp.int32), 0, in_size - 1)
        i1 = jnp.minimum(i0 + 1, in_size - 1)
        return i0, i1, s - i0.astype(jnp.float32)

    r0, r1, rf = src_idx(osize, h)
    c0, c1, cf = src_idx(osize, w)
    rows = p[:, r0, :] * (1.0 - rf)[None, :, None] + p[:, r1, :] * rf[None, :, None]
    return rows[:, :, c0] * (1.0 - cf)[None, None, :] + rows[:, :, c1] * cf[None, None, :]


def _reference(x: jnp.ndarray, divisions) -> jnp.ndarray:
    c, h, w = x.shape
    hh, hw = h // 2, w // 2
    quads = [x[:, :hh, :hw], x[:, :hh, hw:], x[:, hh:, :hw], x[:, hh:, hw:]]
    ups = jnp.stack([_upsample_bilinear_ref(q.astype(jnp.float32), w) for q in quads], 0)
    slabs = []
    for d in range(len(divisions)):
        if d == 0:
            slabs.append(x.astype(jnp.float32)[None])
        slabs.append(ups)
    return jnp.concatenate(slabs, axis=0)


if __name__ == "__main__":
    key = jax.random.PRNGKey(0)
    C, H, W = 4, 16, 16
    x = jax.random.normal(key, (C, H, W), dtype=jnp.float32)
    divisions = [2, 4]

    out = jax.block_until_ready(multi_scales_forward(x, divisions))
    assert out.shape == (1 + 4 * len(divisions), C, H, W), out.shape

    ref = _reference(x, divisions)
    err = float(jnp.max(jnp.abs(out - ref)))
    assert err < 1e-3, err
    print("KERNEL_OK")
</pallas_src>

<mosaic_0001>
module attributes {stable_mosaic.version = 11 : i64} {
  func.func @_multi_scales_kernel(%arg0: i32, %arg1: i32, %arg2: memref<4x256xf32, #tpu.memory_space<vmem>>, %arg3: memref<256x1024xf32, #tpu.memory_space<vmem>>, %arg4: memref<1x4x256xf32, #tpu.memory_space<vmem>>, %arg5: memref<4x4x256xf32, #tpu.memory_space<vmem>>) attributes {dimension_semantics = [#tpu.dimension_semantics<parallel>, #tpu.dimension_semantics<arbitrary>], iteration_bounds = array<i64: 1, 9>, scalar_prefetch = 0 : i64, scratch_operands = 1 : i64, tpu.core_type = #tpu.core_type<tc>, window_params = [{transform_indices = @transform_0, window_bounds = array<i64: 4, 256>}, {pipeline_mode = #tpu.pipeline_mode<synchronous>, transform_indices = @transform_1, window_bounds = array<i64: 256, 1024>}, {transform_indices = @transform_2, window_bounds = array<i64: 1, 4, 256>}]} {
    %c0_i32 = arith.constant 0 : i32
    %0 = arith.cmpi eq, %arg1, %c0_i32 : i32
    %1 = arith.extui %0 : i1 to i32
    %c0_i32_0 = arith.constant 0 : i32
    %2 = arith.cmpi ne, %1, %c0_i32_0 : i32
    scf.if %2 {
      %c0 = arith.constant 0 : index
      %c0_3 = arith.constant 0 : index
      %6 = vector.load %arg2[%c0, %c0_3] : memref<4x256xf32, #tpu.memory_space<vmem>>, vector<4x256xf32>
      %c0_4 = arith.constant 0 : index
      %c0_5 = arith.constant 0 : index
      %7 = vector.load %arg3[%c0_4, %c0_5] : memref<256x1024xf32, #tpu.memory_space<vmem>>, vector<256x1024xf32>
      %cst = arith.constant dense<0.000000e+00> : vector<4x1024xf32>
      %8 = tpu.matmul %6, %7, %cst {dimension_numbers = #tpu.dot_dimension_numbers<[1], [0], [0], [1], [0, 0, 1, 1], [], []>} : vector<4x256xf32>, vector<256x1024xf32>, vector<4x1024xf32> -> vector<4x1024xf32>
      %9 = vector.extract_strided_slice %8 {offsets = [0, 0], sizes = [4, 256], strides = [1, 1]} : vector<4x1024xf32> to vector<4x256xf32>
      %c0_6 = arith.constant 0 : index
      %c0_7 = arith.constant 0 : index
      %c0_8 = arith.constant 0 : index
      %10 = vector.load %arg5[%c0_6, %c0_7, %c0_8] : memref<4x4x256xf32, #tpu.memory_space<vmem>>, vector<1x4x256xf32>
      %11 = vector.shape_cast %10 : vector<1x4x256xf32> to vector<4x256xf32>
      %12 = vector.shape_cast %9 : vector<4x256xf32> to vector<1x4x256xf32>
      tpu.vector_store %arg5[%c0_6, %c0_7, %c0_8], %12 {strides = array<i32>} : memref<4x4x256xf32, #tpu.memory_space<vmem>>, vector<1x4x256xf32>,
      %13 = vector.extract_strided_slice %8 {offsets = [0, 256], sizes = [4, 256], strides = [1, 1]} : vector<4x1024xf32> to vector<4x256xf32>
      %c1 = arith.constant 1 : index
      %c0_9 = arith.constant 0 : index
      %c0_10 = arith.constant 0 : index
      %14 = vector.load %arg5[%c1, %c0_9, %c0_10] : memref<4x4x256xf32, #tpu.memory_space<vmem>>, vector<1x4x256xf32>
      %15 = vector.shape_cast %14 : vector<1x4x256xf32> to vector<4x256xf32>
      %16 = vector.shape_cast %13 : vector<4x256xf32> to vector<1x4x256xf32>
      tpu.vector_store %arg5[%c1, %c0_9, %c0_10], %16 {strides = array<i32>} : memref<4x4x256xf32, #tpu.memory_space<vmem>>, vector<1x4x256xf32>,
      %17 = vector.extract_strided_slice %8 {offsets = [0, 512], sizes = [4, 256], strides = [1, 1]} : vector<4x1024xf32> to vector<4x256xf32>
      %c2 = arith.constant 2 : index
      %c0_11 = arith.constant 0 : index
      %c0_12 = arith.constant 0 : index
      %18 = vector.load %arg5[%c2, %c0_11, %c0_12] : memref<4x4x256xf32, #tpu.memory_space<vmem>>, vector<1x4x256xf32>
      %19 = vector.shape_cast %18 : vector<1x4x256xf32> to vector<4x256xf32>
      %20 = vector.shape_cast %17 : vector<4x256xf32> to vector<1x4x256xf32>
      tpu.vector_store %arg5[%c2, %c0_11, %c0_12], %20 {strides = array<i32>} : memref<4x4x256xf32, #tpu.memory_space<vmem>>, vector<1x4x256xf32>,
      %21 = vector.extract_strided_slice %8 {offsets = [0, 768], sizes = [4, 256], strides = [1, 1]} : vector<4x1024xf32> to vector<4x256xf32>
      %c3 = arith.constant 3 : index
      %c0_13 = arith.constant 0 : index
      %c0_14 = arith.constant 0 : index
      %22 = vector.load %arg5[%c3, %c0_13, %c0_14] : memref<4x4x256xf32, #tpu.memory_space<vmem>>, vector<1x4x256xf32>
      %23 = vector.shape_cast %22 : vector<1x4x256xf32> to vector<4x256xf32>
      %24 = vector.shape_cast %21 : vector<4x256xf32> to vector<1x4x256xf32>
      tpu.vector_store %arg5[%c3, %c0_13, %c0_14], %24 {strides = array<i32>} : memref<4x4x256xf32, #tpu.memory_space<vmem>>, vector<1x4x256xf32>,
      %c0_15 = arith.constant 0 : index
      %c0_16 = arith.constant 0 : index
      %c0_17 = arith.constant 0 : index
      %25 = vector.load %arg4[%c0_15, %c0_16, %c0_17] : memref<1x4x256xf32, #tpu.memory_space<vmem>>, vector<1x4x256xf32>
      %26 = vector.shape_cast %25 : vector<1x4x256xf32> to vector<4x256xf32>
      %27 = vector.shape_cast %6 : vector<4x256xf32> to vector<1x4x256xf32>
      tpu.vector_store %arg4[%c0_15, %c0_16, %c0_17], %27 {strides = array<i32>} : memref<1x4x256xf32, #tpu.memory_space<vmem>>, vector<1x4x256xf32>,
    } else {
    }
    %c0_i32_1 = arith.constant 0 : i32
    %3 = arith.cmpi sgt, %arg1, %c0_i32_1 : i32
    %4 = arith.extui %3 : i1 to i32
    %c0_i32_2 = arith.constant 0 : i32
    %5 = arith.cmpi ne, %4, %c0_i32_2 : i32
    scf.if %5 {
      %c1_i32 = arith.constant 1 : i32
      %6 = arith.subi %arg1, %c1_i32 : i32
      %c4_i32 = arith.constant 4 : i32
      %c0_i32_3 = arith.constant 0 : i32
      %7 = arith.cmpi eq, %c4_i32, %c0_i32_3 : i32
      %c1_i32_4 = arith.constant 1 : i32
      %8 = arith.select %7, %c1_i32_4, %c4_i32 : i32
      %9 = arith.remsi %6, %8 : i32
      %c0_i32_5 = arith.constant 0 : i32
      %10 = arith.cmpi ne, %9, %c0_i32_5 : i32
      %c0_i32_6 = arith.constant 0 : i32
      %11 = arith.cmpi slt, %9, %c0_i32_6 : i32
      %c0_i32_7 = arith.constant 0 : i32
      %12 = arith.cmpi slt, %8, %c0_i32_7 : i32
      %13 = arith.xori %11, %12 : i1
      %14 = arith.andi %13, %10 : i1
      %15 = arith.addi %9, %8 : i32
      %16 = arith.select %14, %15, %9 : i32
      %17 = arith.index_cast %16 : i32 to index
      %c0 = arith.constant 0 : index
      %c0_8 = arith.constant 0 : index
      %18 = vector.load %arg5[%17, %c0, %c0_8] : memref<4x4x256xf32, #tpu.memory_space<vmem>>, vector<1x4x256xf32>
      %19 = vector.shape_cast %18 : vector<1x4x256xf32> to vector<4x256xf32>
      %c0_9 = arith.constant 0 : index
      %c0_10 = arith.constant 0 : index
      %c0_11 = arith.constant 0 : index
      %20 = vector.load %arg4[%c0_9, %c0_10, %c0_11] : memref<1x4x256xf32, #tpu.memory_space<vmem>>, vector<1x4x256xf32>
      %21 = vector.shape_cast %20 : vector<1x4x256xf32> to vector<4x256xf32>
      %22 = vector.shape_cast %19 : vector<4x256xf32> to vector<1x4x256xf32>
      tpu.vector_store %arg4[%c0_9, %c0_10, %c0_11], %22 {strides = array<i32>} : memref<1x4x256xf32, #tpu.memory_space<vmem>>, vector<1x4x256xf32>,
    } else {
    }
    return
  }
  func.func @transform_0(%arg0: i32, %arg1: i32) -> (i32, i32) {
    %c0_i32 = arith.constant 0 : i32
    %c0_i32_0 = arith.constant 0 : i32
    return %arg0, %c0_i32 : i32, i32
  }
  func.func @transform_1(%arg0: i32, %arg1: i32) -> (i32, i32) {
    %c0_i32 = arith.constant 0 : i32
    %c0_i32_0 = arith.constant 0 : i32
    %c0_i32_1 = arith.constant 0 : i32
    return %c0_i32, %c0_i32_0 : i32, i32
  }
  func.func @transform_2(%arg0: i32, %arg1: i32) -> (i32, i32, i32) {
    %c0_i32 = arith.constant 0 : i32
    %c0_i32_0 = arith.constant 0 : i32
    return %arg1, %arg0, %c0_i32 : i32, i32, i32
  }
}

</mosaic_0001>

<llo_original>
// kernel: tpu_custom_call.1
$region0: #{tpu_custom_call.1}
  #allocation0 [shape = 'u32[]', space=smem, size = 0x4, offset = 0x4, fixed_abs, tag = 'smem constant byte address 0x4 - core index']
  #allocation1 [shape = 'u32[144,128]{1,0:T(1,128)}', space=vmem, size = 0x12000, scoped, tag = 'internal scratch']
  #allocation2 [shape = 'f32[4,4,256]{2,1,0:T(4,128)}', space=vmem, size = 0x4000, scoped, tag = 'scratch operand']
  %s0 = inlined_call_operand.hbm [shape: f32[4,256], index: 0, kind: input, shape index: {}]
  %s1 = inlined_call_operand.hbm [shape: f32[256,1024], index: 1, kind: input, shape index: {}]
  %s2 = inlined_call_operand.hbm [shape: f32[9,4,256], index: 2, kind: output, shape index: {}]
  %s3 = sld [smem:[#allocation0]]
  $region57: #{tpu_custom_call.1} parent=0
    _
  %s5 = ssub.s32 1, %s3
  %s6 = scalar_select 0, %s5, %s3
  $region1: #{tpu_custom_call.1} parent=0
    #allocation3 [shape = 'u8[4096]{0}', space=vmem, size = 0x1000, scoped, tag = 'input window, operand 0, single buffered']
    #allocation4 [shape = 's32[2]{0}', space=sflag, size = 0x8, scoped, tag = 'scoped memory for tpu_custom_call.1']
    #allocation5 [shape = 's32[2]{0}', space=sflag, size = 0x8, scoped, tag = 'scoped memory for tpu_custom_call.1']
    #allocation6 [shape = 'u8[1048576]{0}', space=vmem, size = 0x100000, scoped, tag = 'input window, operand 1, single buffered']
    #allocation7 [shape = 's32[1]{0}', space=sflag, size = 0x4, scoped, tag = 'scoped memory for tpu_custom_call.1']
    #allocation8 [shape = 'u8[8192]{0}', space=vmem, size = 0x2000, scoped, tag = 'output window, operand 0']
    %7 = vsyncpa [#allocation4], 0
    %8 = vsyncpa [#allocation7], 0
    %9 = vsyncpa [#allocation5], 0
    %s10 = scalar_lea.sflag [#allocation5], 1
    %11 = vsyncpa %s10, 0
    loop: start=0, step=1, limit=11
    $region2: #{tpu_custom_call.1} parent=1 // loop_pre_header
      _
    $region3: #{tpu_custom_call.1} parent=1 // loop_header
      %s13 = sphi 0, %s17
      %p14 = scmp.ge.s32.totalorder %s13, 11
      %s20 = sphi 0, %s32
      %s21 = sphi 0, %s28
      %s22 = sphi 0, %s20
      %s23 = sphi 0, %s21
      %s24 = sphi 0, %s22
      %s25 = sphi 0, %s23
      %s35 = sphi 0, %s37
      %s38 = sphi 0, %s35
      %s39 = sphi 0, %s38
      %s55 = sphi 0, %s39
      %s59 = sphi 0, %s59
      %s61 = sphi 0, %s59
      %s62 = sphi 0, %s61
      %s76 = sphi 0, %s62
      %s84 = sphi 0, %s86
      %s87 = sphi 0, %s84
      %s88 = sphi 0, %s87
      %s104 = sphi 0, %s88
    $region4: #{tpu_custom_call.1} parent=1 // loop_header_branch
      %16 = sbr.rel (%p14) target = $region8
    $region5: #{tpu_custom_call.1} parent=1 // loop_body
      %s18 = ssub.s32 %s13, 1
      %s19 = ssub.s32 %s13, 2
      %s26 = sadd.s32 1, %s21
      %p27 = scmp.ge.s32.totalorder %s26, 9
      %s28 = scalar_select %p27, 0, %s26
      %s29 = sadd.s32 1, %s20
      %s30 = scalar_select %p27, %s29, %s20
      %p31 = scmp.ge.s32.totalorder %s30, 1
      %s32 = scalar_select %p31, 0, %s30
      %s33 = ssub.s32 %s20, %s32
      %p34 = scmp.eq.s32.totalorder %s33, 0
      %s36 = sadd.s32 %s35, 1
      %s37 = scalar_select %p34, %s35, %s36
      %p40 = pneg %p34
      %p41 = scmp.eq.s32.totalorder %s13, 8
      %p42 = por %p40, %p41
      %p43 = scmp.ne.s32.totalorder %s35, %s38
      %p44 = scmp.eq.s32.totalorder %s13, 0
      %p45 = por %p43, %p44
      %p46 = scmp.ne.s32.totalorder %s35, %s38
      %p47 = scmp.eq.s32.totalorder %s18, 8
      %p48 = por %p46, %p47
      %p49 = scmp.ne.s32.totalorder %s38, %s39
      %p50 = scmp.eq.s32.totalorder %s18, 0
      %p51 = por %p49, %p50
      %p52 = scmp.ne.s32.totalorder %s38, %s39
      %p53 = scmp.eq.s32.totalorder %s19, 8
      %p54 = por %p52, %p53
      %p56 = scmp.ne.s32.totalorder %s39, %s55
      %p57 = scmp.eq.s32.totalorder %s19, 0
      %p58 = por %p56, %p57
      %s60 = sadd.s32 %s59, 1
      %p63 = scmp.eq.s32.totalorder %s13, 8
      %p64 = scmp.ne.s32.totalorder %s59, %s61
      %p65 = scmp.eq.s32.totalorder %s13, 0
      %p66 = por %p64, %p65
      %p67 = scmp.ne.s32.totalorder %s59, %s61
      %p68 = scmp.eq.s32.totalorder %s18, 8
      %p69 = por %p67, %p68
      %p70 = scmp.ne.s32.totalorder %s61, %s62
      %p71 = scmp.eq.s32.totalorder %s18, 0
      %p72 = por %p70, %p71
      %p73 = scmp.ne.s32.totalorder %s61, %s62
      %p74 = scmp.eq.s32.totalorder %s19, 8
      %p75 = por %p73, %p74
      %p77 = scmp.ne.s32.totalorder %s62, %s76
      %p78 = scmp.eq.s32.totalorder %s19, 0
      %p79 = por %p77, %p78
      %s80 = ssub.s32 %s21, %s28
      %s81 = ssub.s32 %s20, %s32
      %s82 = sor.u32 %s80, %s81
      %p83 = scmp.eq.s32.totalorder %s82, 0
      %s85 = sadd.s32 %s84, 1
      %s86 = scalar_select %p83, %s84, %s85
      %p89 = pneg %p83
      %p90 = scmp.eq.s32.totalorder %s13, 8
      %p91 = por %p89, %p90
      %p92 = scmp.ne.s32.totalorder %s84, %s87
      %p93 = scmp.eq.s32.totalorder %s13, 0
      %p94 = por %p92, %p93
      %p95 = scmp.ne.s32.totalorder %s84, %s87
      %p96 = scmp.eq.s32.totalorder %s18, 8
      %p97 = por %p95, %p96
      %p98 = scmp.ne.s32.totalorder %s87, %s88
      %p99 = scmp.eq.s32.totalorder %s18, 0
      %p100 = por %p98, %p99
      %p101 = scmp.ne.s32.totalorder %s87, %s88
      %p102 = scmp.eq.s32.totalorder %s19, 8
      %p103 = por %p101, %p102
      %p105 = scmp.ne.s32.totalorder %s88, %s104
      %p106 = scmp.eq.s32.totalorder %s19, 0
      %p107 = por %p105, %p106
      %p108 = scmp.le.s32.totalorder 1, %s13
      %p109 = scmp.lt.s32.totalorder %s13, 10
      %p110 = pnand %p108, %p109
      %p111 = pneg %p110
      // Predicated region
      $region9: #{tpu_custom_call.1} parent=5 // pred_check
        _
      $region10: #{tpu_custom_call.1} parent=5 // pred_check_branch
        %113 = sbr.rel (%p110) target = $region12
      $region11: #{tpu_custom_call.1} parent=5 // pred_region
        %s114 = ssub.s32 %s13, 1
        // Predicated region
        $region13: #{tpu_custom_call.1} parent=11 // pred_check
          %p115 = pneg %p51
        $region14: #{tpu_custom_call.1} parent=11 // pred_check_branch
          %117 = sbr.rel (%p115) target = $region16
        $region15: #{tpu_custom_call.1} parent=11 // pred_region
          %s119 = ssub.s32 128, 128
          %120 = vsyncadd [#allocation4], %s119
          %s121 = smul.addr %s22, 2
          %s122 = smul.addr %s121, 64
          %s123 = scalar_lea.hbm %s0, %s122
          %s125 = sshll.u32 [#allocation3], 4
          %s126 = int_to_ptr.vmem [resolvable:$true] %s125
          %128 = dma.hbm_to_vmem [thread:$0]  %s123, 128, %s126, [#allocation4]
        $region16: #{tpu_custom_call.1} parent=11 // pred_fallthru
          _
        // Predicated region
        $region17: #{tpu_custom_call.1} parent=11 // pred_check
          %p129 = pneg %p72
        $region18: #{tpu_custom_call.1} parent=11 // pred_check_branch
          %131 = sbr.rel (%p129) target = $region20
        $region19: #{tpu_custom_call.1} parent=11 // pred_region
          %s133 = ssub.s32 32768, 32768
          %134 = vsyncadd [#allocation7], %s133
          %s135 = sshll.u32 [#allocation6], 4
          %s136 = int_to_ptr.vmem [resolvable:$true] %s135
          %141 = dma.hbm_to_vmem [thread:$0]  %s1, 32768, %s136, [#allocation7], 1024, 1024, 64
        $region20: #{tpu_custom_call.1} parent=11 // pred_fallthru
          _
      $region12: #{tpu_custom_call.1} parent=5 // pred_fallthru
        _
      %p142 = scmp.lt.s32.totalorder %s13, 9
      // Predicated region
      $region21: #{tpu_custom_call.1} parent=5 // pred_check
        %p143 = pneg %p142
      $region22: #{tpu_custom_call.1} parent=5 // pred_check_branch
        %145 = sbr.rel (%p143) target = $region24
      $region23: #{tpu_custom_call.1} parent=5 // pred_region
        _
      $region24: #{tpu_custom_call.1} parent=5 // pred_fallthru
        _
      %p146 = scmp.le.s32.totalorder 1, %s13
      %p147 = scmp.lt.s32.totalorder %s13, 10
      %p148 = pnand %p146, %p147
      %p149 = pneg %p148
      // Predicated region
      $region25: #{tpu_custom_call.1} parent=5 // pred_check
        _
      $region26: #{tpu_custom_call.1} parent=5 // pred_check_branch
        %151 = sbr.rel (%p148) target = $region28
      $region27: #{tpu_custom_call.1} parent=5 // pred_region
        %s152 = ssub.s32 %s13, 1
        // Predicated region
        $region29: #{tpu_custom_call.1} parent=27 // pred_check
          %p153 = pneg %p51
        $region30: #{tpu_custom_call.1} parent=27 // pred_check_branch
          %155 = sbr.rel (%p153) target = $region32
        $region31: #{tpu_custom_call.1} parent=27 // pred_region
          %156 = dma.done [#allocation4], 128
        $region32: #{tpu_custom_call.1} parent=27 // pred_fallthru
          _
        // Predicated region
        $region33: #{tpu_custom_call.1} parent=27 // pred_check
          %p157 = pneg %p72
        $region34: #{tpu_custom_call.1} parent=27 // pred_check_branch
          %159 = sbr.rel (%p157) target = $region36
        $region35: #{tpu_custom_call.1} parent=27 // pred_region
          %160 = dma.done [#allocation7], 32768
        $region36: #{tpu_custom_call.1} parent=27 // pred_fallthru
          _
        %p161 = pneg %p51
        %p162 = pneg %p48
        %p163 = pneg %p72
        %p164 = pneg %p69
        %p165 = pneg %p100
        %p166 = pneg %p97
        %s167 = sand.u32 %s87, 1
        %s168 = scalar_lea.sflag [#allocation5], %s167
        %s169 = sand.u32 %s87, 1
        %s170 = smul.addr %s169, 8
        %s171 = scalar_lea.vmem [#allocation8], %s170
        %p172 = scmp.eq.s32.totalorder %s23, 0
        // Predicated region
        $region37: #{tpu_custom_call.1} parent=27 // pred_check
          %p173 = pneg %p172
        $region38: #{tpu_custom_call.1} parent=27 // pred_check_branch
          %175 = sbr.rel (%p173) target = $region40
        $region39: #{tpu_custom_call.1} parent=27 // pred_region
          %v176 = vld [vmem:[#allocation3] sm:$0xff]
          %v177 = vld [vmem:[#allocation6] sm:$0xff]
          %v178 = vld [vmem:[#allocation6 + $0x8] sm:$0xff]
          %v179 = vld [vmem:[#allocation6 + $0x10] sm:$0xff]
          %v180 = vld [vmem:[#allocation6 + $0x18] sm:$0xff]
          %v181 = vld [vmem:[#allocation6 + $0x20] sm:$0xff]
          %v182 = vld [vmem:[#allocation6 + $0x28] sm:$0xff]
          %v183 = vld [vmem:[#allocation6 + $0x30] sm:$0xff]
          %v184 = vld [vmem:[#allocation6 + $0x38] sm:$0xff]
          %v185 = vld [vmem:[#allocation6 + $0x40] sm:$0xff]
          %v186 = vld [vmem:[#allocation6 + $0x48] sm:$0xff]
          %v187 = vld [vmem:[#allocation6 + $0x50] sm:$0xff]
          %v188 = vld [vmem:[#allocation6 + $0x58] sm:$0xff]
          %v189 = vld [vmem:[#allocation6 + $0x60] sm:$0xff]
          %v190 = vld [vmem:[#allocation6 + $0x68] sm:$0xff]
          %v191 = vld [vmem:[#allocation6 + $0x70] sm:$0xff]
          %v192 = vld [vmem:[#allocation6 + $0x78] sm:$0xff]
          %v193 = vld [vmem:[#allocation6 + $0x80] sm:$0xff]
          %v194 = vld [vmem:[#allocation6 + $0x88] sm:$0xff]
          %v195 = vld [vmem:[#allocation6 + $0x90] sm:$0xff]
          %v196 = vld [vmem:[#allocation6 + $0x98] sm:$0xff]
          %v197 = vld [vmem:[#allocation6 + $0xa0] sm:$0xff]
          %v198 = vld [vmem:[#allocation6 + $0xa8] sm:$0xff]
          %v199 = vld [vmem:[#allocation6 + $0xb0] sm:$0xff]
          %v200 = vld [vmem:[#allocation6 + $0xb8] sm:$0xff]
          %v201 = vld [vmem:[#allocation6 + $0xc0] sm:$0xff]
          %v202 = vld [vmem:[#allocation6 + $0xc8] sm:$0xff]
          %v203 = vld [vmem:[#allocation6 + $0xd0] sm:$0xff]
          %v204 = vld [vmem:[#allocation6 + $0xd8] sm:$0xff]
          %v205 = vld [vmem:[#allocation6 + $0xe0] sm:$0xff]
          %v206 = vld [vmem:[#allocation6 + $0xe8] sm:$0xff]
          %v207 = vld [vmem:[#allocation6 + $0xf0] sm:$0xff]
          %v208 = vld [vmem:[#allocation6 + $0xf8] sm:$0xff]
          %v209 = vld [vmem:[#allocation6 + $0x100] sm:$0xff]
          %v210 = vld [vmem:[#allocation6 + $0x108] sm:$0xff]
          %v211 = vld [vmem:[#allocation6 + $0x110] sm:$0xff]
          %v212 = vld [vmem:[#allocation6 + $0x118] sm:$0xff]
          %v213 = vld [vmem:[#allocation6 + $0x120] sm:$0xff]
          %v214 = vld [vmem:[#allocation6 + $0x128] sm:$0xff]
          %v215 = vld [vmem:[#allocation6 + $0x130] sm:$0xff]
          %v216 = vld [vmem:[#allocation6 + $0x138] sm:$0xff]
          %v217 = vld [vmem:[#allocation6 + $0x140] sm:$0xff]
          %v218 = vld [vmem:[#allocation6 + $0x148] sm:$0xff]
          %v219 = vld [vmem:[#allocation6 + $0x150] sm:$0xff]
          %v220 = vld [vmem:[#allocation6 + $0x158] sm:$0xff]
          %v221 = vld [vmem:[#allocation6 + $0x160] sm:$0xff]
          %v222 = vld [vmem:[#allocation6 + $0x168] sm:$0xff]
          %v223 = vld [vmem:[#allocation6 + $0x170] sm:$0xff]
          %v224 = vld [vmem:[#allocation6 + $0x178] sm:$0xff]
          %v225 = vld [vmem:[#allocation6 + $0x180] sm:$0xff]
          %v226 = vld [vmem:[#allocation6 + $0x188] sm:$0xff]
          %v227 = vld [vmem:[#allocation6 + $0x190] sm:$0xff]
          %v228 = vld [vmem:[#allocation6 + $0x198] sm:$0xff]
          %v229 = vld [vmem:[#allocation6 + $0x1a0] sm:$0xff]
          %v230 = vld [vmem:[#allocation6 + $0x1a8] sm:$0xff]
          %v231 = vld [vmem:[#allocation6 + $0x1b0] sm:$0xff]
          %v232 = vld [vmem:[#allocation6 + $0x1b8] sm:$0xff]
          %v233 = vld [vmem:[#allocation6 + $0x1c0] sm:$0xff]
          %v234 = vld [vmem:[#allocation6 + $0x1c8] sm:$0xff]
          %v235 = vld [vmem:[#allocation6 + $0x1d0] sm:$0xff]
          %v236 = vld [vmem:[#allocation6 + $0x1d8] sm:$0xff]
          %v237 = vld [vmem:[#allocation6 + $0x1e0] sm:$0xff]
          %v238 = vld [vmem:[#allocation6 + $0x1e8] sm:$0xff]
          %v239 = vld [vmem:[#allocation6 + $0x1f0] sm:$0xff]
          %v240 = vld [vmem:[#allocation6 + $0x1f8] sm:$0xff]
          %v241 = vld [vmem:[#allocation6 + $0x200] sm:$0xff]
          %v242 = vld [vmem:[#allocation6 + $0x208] sm:$0xff]
          %v243 = vld [vmem:[#allocation6 + $0x210] sm:$0xff]
          %v244 = vld [vmem:[#allocation6 + $0x218] sm:$0xff]
          %v245 = vld [vmem:[#allocation6 + $0x220] sm:$0xff]
          %v246 = vld [vmem:[#allocation6 + $0x228] sm:$0xff]
          %v247 = vld [vmem:[#allocation6 + $0x230] sm:$0xff]
          %v248 = vld [vmem:[#allocation6 + $0x238] sm:$0xff]
          %v249 = vld [vmem:[#allocation6 + $0x240] sm:$0xff]
          %v250 = vld [vmem:[#allocation6 + $0x248] sm:$0xff]
          %v251 = vld [vmem:[#allocation6 + $0x250] sm:$0xff]
          %v252 = vld [vmem:[#allocation6 + $0x258] sm:$0xff]
          %v253 = vld [vmem:[#allocation6 + $0x260] sm:$0xff]
          %v254 = vld [vmem:[#allocation6 + $0x268] sm:$0xff]
          %v255 = vld [vmem:[#allocation6 + $0x270] sm:$0xff]
          %v256 = vld [vmem:[#allocation6 + $0x278] sm:$0xff]
          %v257 = vld [vmem:[#allocation6 + $0x280] sm:$0xff]
          %v258 = vld [vmem:[#allocation6 + $0x288] sm:$0xff]
          %v259 = vld [vmem:[#allocation6 + $0x290] sm:$0xff]
          %v260 = vld [vmem:[#allocation6 + $0x298] sm:$0xff]
          %v261 = vld [vmem:[#allocation6 + $0x2a0] sm:$0xff]
          %v262 = vld [vmem:[#allocation6 + $0x2a8] sm:$0xff]
          %v263 = vld [vmem:[#allocation6 + $0x2b0] sm:$0xff]
          %v264 = vld [vmem:[#allocation6 + $0x2b8] sm:$0xff]
          %v265 = vld [vmem:[#allocation6 + $0x2c0] sm:$0xff]
          %v266 = vld [vmem:[#allocation6 + $0x2c8] sm:$0xff]
          %v267 = vld [vmem:[#allocation6 + $0x2d0] sm:$0xff]
          %v268 = vld [vmem:[#allocation6 + $0x2d8] sm:$0xff]
          %v269 = vld [vmem:[#allocation6 + $0x2e0] sm:$0xff]
          %v270 = vld [vmem:[#allocation6 + $0x2e8] sm:$0xff]
          %v271 = vld [vmem:[#allocation6 + $0x2f0] sm:$0xff]
          %v272 = vld [vmem:[#allocation6 + $0x2f8] sm:$0xff]
          %v273 = vld [vmem:[#allocation6 + $0x300] sm:$0xff]
          %v274 = vld [vmem:[#allocation6 + $0x308] sm:$0xff]
          %v275 = vld [vmem:[#allocation6 + $0x310] sm:$0xff]
          %v276 = vld [vmem:[#allocation6 + $0x318] sm:$0xff]
          %v277 = vld [vmem:[#allocation6 + $0x320] sm:$0xff]
          %v278 = vld [vmem:[#allocation6 + $0x328] sm:$0xff]
          %v279 = vld [vmem:[#allocation6 + $0x330] sm:$0xff]
          %v280 = vld [vmem:[#allocation6 + $0x338] sm:$0xff]
          %v281 = vld [vmem:[#allocation6 + $0x340] sm:$0xff]
          %v282 = vld [vmem:[#allocation6 + $0x348] sm:$0xff]
          %v283 = vld [vmem:[#allocation6 + $0x350] sm:$0xff]
          %v284 = vld [vmem:[#allocation6 + $0x358] sm:$0xff]
          %v285 = vld [vmem:[#allocation6 + $0x360] sm:$0xff]
          %v286 = vld [vmem:[#allocation6 + $0x368] sm:$0xff]
          %v287 = vld [vmem:[#allocation6 + $0x370] sm:$0xff]
          %v288 = vld [vmem:[#allocation6 + $0x378] sm:$0xff]
          %v289 = vld [vmem:[#allocation6 + $0x380] sm:$0xff]
          %v290 = vld [vmem:[#allocation6 + $0x388] sm:$0xff]
          %v291 = vld [vmem:[#allocation6 + $0x390] sm:$0xff]
          %v292 = vld [vmem:[#allocation6 + $0x398] sm:$0xff]
          %v293 = vld [vmem:[#allocation6 + $0x3a0] sm:$0xff]
          %v294 = vld [vmem:[#allocation6 + $0x3a8] sm:$0xff]
          %v295 = vld [vmem:[#allocation6 + $0x3b0] sm:$0xff]
          %v296 = vld [vmem:[#allocation6 + $0x3b8] sm:$0xff]
          %v297 = vld [vmem:[#allocation6 + $0x3c0] sm:$0xff]
          %v298 = vld [vmem:[#allocation6 + $0x3c8] sm:$0xff]
          %v299 = vld [vmem:[#allocation6 + $0x3d0] sm:$0xff]
          %v300 = vld [vmem:[#allocation6 + $0x3d8] sm:$0xff]
          %v301 = vld [vmem:[#allocation6 + $0x3e0] sm:$0xff]
          %v302 = vld [vmem:[#allocation6 + $0x3e8] sm:$0xff]
          %v303 = vld [vmem:[#allocation6 + $0x3f0] sm:$0xff]
          %v304 = vld [vmem:[#allocation6 + $0x3f8] sm:$0xff]
          %v305 = vld [vmem:[#allocation6 + $0x400] sm:$0xff]
          %v306 = vld [vmem:[#allocation6 + $0x408] sm:$0xff]
          %v307 = vld [vmem:[#allocation6 + $0x410] sm:$0xff]
          %v308 = vld [vmem:[#allocation6 + $0x418] sm:$0xff]
          %v309 = vld [vmem:[#allocation6 + $0x420] sm:$0xff]
          %v310 = vld [vmem:[#allocation6 + $0x428] sm:$0xff]
          %v311 = vld [vmem:[#allocation6 + $0x430] sm:$0xff]
          %v312 = vld [vmem:[#allocation6 + $0x438] sm:$0xff]
          %v313 = vld [vmem:[#allocation6 + $0x440] sm:$0xff]
          %v314 = vld [vmem:[#allocation6 + $0x448] sm:$0xff]
          %v315 = vld [vmem:[#allocation6 + $0x450] sm:$0xff]
          %v316 = vld [vmem:[#allocation6 + $0x458] sm:$0xff]
          %v317 = vld [vmem:[#allocation6 + $0x460] sm:$0xff]
          %v318 = vld [vmem:[#allocation6 + $0x468] sm:$0xff]
          %v319 = vld [vmem:[#allocation6 + $0x470] sm:$0xff]
          %v320 = vld [vmem:[#allocation6 + $0x478] sm:$0xff]
          %v321 = vld [vmem:[#allocation6 + $0x480] sm:$0xff]
          %v322 = vld [vmem:[#allocation6 + $0x488] sm:$0xff]
          %v323 = vld [vmem:[#allocation6 + $0x490] sm:$0xff]
          %v324 = vld [vmem:[#allocation6 + $0x498] sm:$0xff]
          %v325 = vld [vmem:[#allocation6 + $0x4a0] sm:$0xff]
          %v326 = vld [vmem:[#allocation6 + $0x4a8] sm:$0xff]
          %v327 = vld [vmem:[#allocation6 + $0x4b0] sm:$0xff]
          %v328 = vld [vmem:[#allocation6 + $0x4b8] sm:$0xff]
          %v329 = vld [vmem:[#allocation6 + $0x4c0] sm:$0xff]
          %v330 = vld [vmem:[#allocation6 + $0x4c8] sm:$0xff]
          %v331 = vld [vmem:[#allocation6 + $0x4d0] sm:$0xff]
          %v332 = vld [vmem:[#allocation6 + $0x4d8] sm:$0xff]
          %v333 = vld [vmem:[#allocation6 + $0x4e0] sm:$0xff]
          %v334 = vld [vmem:[#allocation6 + $0x4e8] sm:$0xff]
          %v335 = vld [vmem:[#allocation6 + $0x4f0] sm:$0xff]
          %v336 = vld [vmem:[#allocation6 + $0x4f8] sm:$0xff]
          %v337 = vld [vmem:[#allocation6 + $0x500] sm:$0xff]
          %v338 = vld [vmem:[#allocation6 + $0x508] sm:$0xff]
          %v339 = vld [vmem:[#allocation6 + $0x510] sm:$0xff]
          %v340 = vld [vmem:[#allocation6 + $0x518] sm:$0xff]
          %v341 = vld [vmem:[#allocation6 + $0x520] sm:$0xff]
          %v342 = vld [vmem:[#allocation6 + $0x528] sm:$0xff]
          %v343 = vld [vmem:[#allocation6 + $0x530] sm:$0xff]
          %v344 = vld [vmem:[#allocation6 + $0x538] sm:$0xff]
          %v345 = vld [vmem:[#allocation6 + $0x540] sm:$0xff]
          %v346 = vld [vmem:[#allocation6 + $0x548] sm:$0xff]
          %v347 = vld [vmem:[#allocation6 + $0x550] sm:$0xff]
          %v348 = vld [vmem:[#allocation6 + $0x558] sm:$0xff]
          %v349 = vld [vmem:[#allocation6 + $0x560] sm:$0xff]
          %v350 = vld [vmem:[#allocation6 + $0x568] sm:$0xff]
          %v351 = vld [vmem:[#allocation6 + $0x570] sm:$0xff]
          %v352 = vld [vmem:[#allocation6 + $0x578] sm:$0xff]
          %v353 = vld [vmem:[#allocation6 + $0x580] sm:$0xff]
          %v354 = vld [vmem:[#allocation6 + $0x588] sm:$0xff]
          %v355 = vld [vmem:[#allocation6 + $0x590] sm:$0xff]
          %v356 = vld [vmem:[#allocation6 + $0x598] sm:$0xff]
          %v357 = vld [vmem:[#allocation6 + $0x5a0] sm:$0xff]
          %v358 = vld [vmem:[#allocation6 + $0x5a8] sm:$0xff]
          %v359 = vld [vmem:[#allocation6 + $0x5b0] sm:$0xff]
          %v360 = vld [vmem:[#allocation6 + $0x5b8] sm:$0xff]
          %v361 = vld [vmem:[#allocation6 + $0x5c0] sm:$0xff]
          %v362 = vld [vmem:[#allocation6 + $0x5c8] sm:$0xff]
          %v363 = vld [vmem:[#allocation6 + $0x5d0] sm:$0xff]
          %v364 = vld [vmem:[#allocation6 + $0x5d8] sm:$0xff]
          %v365 = vld [vmem:[#allocation6 + $0x5e0] sm:$0xff]
          %v366 = vld [vmem:[#allocation6 + $0x5e8] sm:$0xff]
          %v367 = vld [vmem:[#allocation6 + $0x5f0] sm:$0xff]
          %v368 = vld [vmem:[#allocation6 + $0x5f8] sm:$0xff]
          %v369 = vld [vmem:[#allocation6 + $0x600] sm:$0xff]
          %v370 = vld [vmem:[#allocation6 + $0x608] sm:$0xff]
          %v371 = vld [vmem:[#allocation6 + $0x610] sm:$0xff]
          %v372 = vld [vmem:[#allocation6 + $0x618] sm:$0xff]
          %v373 = vld [vmem:[#allocation6 + $0x620] sm:$0xff]
          %v374 = vld [vmem:[#allocation6 + $0x628] sm:$0xff]
          %v375 = vld [vmem:[#allocation6 + $0x630] sm:$0xff]
          %v376 = vld [vmem:[#allocation6 + $0x638] sm:$0xff]
          %v377 = vld [vmem:[#allocation6 + $0x640] sm:$0xff]
          %v378 = vld [vmem:[#allocation6 + $0x648] sm:$0xff]
          %v379 = vld [vmem:[#allocation6 + $0x650] sm:$0xff]
          %v380 = vld [vmem:[#allocation6 + $0x658] sm:$0xff]
          %v381 = vld [vmem:[#allocation6 + $0x660] sm:$0xff]
          %v382 = vld [vmem:[#allocation6 + $0x668] sm:$0xff]
          %v383 = vld [vmem:[#allocation6 + $0x670] sm:$0xff]
          %v384 = vld [vmem:[#allocation6 + $0x678] sm:$0xff]
          %v385 = vld [vmem:[#allocation6 + $0x680] sm:$0xff]
          %v386 = vld [vmem:[#allocation6 + $0x688] sm:$0xff]
          %v387 = vld [vmem:[#allocation6 + $0x690] sm:$0xff]
          %v388 = vld [vmem:[#allocation6 + $0x698] sm:$0xff]
          %v389 = vld [vmem:[#allocation6 + $0x6a0] sm:$0xff]
          %v390 = vld [vmem:[#allocation6 + $0x6a8] sm:$0xff]
          %v391 = vld [vmem:[#allocation6 + $0x6b0] sm:$0xff]
          %v392 = vld [vmem:[#allocation6 + $0x6b8] sm:$0xff]
          %v393 = vld [vmem:[#allocation6 + $0x6c0] sm:$0xff]
          %v394 = vld [vmem:[#allocation6 + $0x6c8] sm:$0xff]
          %v395 = vld [vmem:[#allocation6 + $0x6d0] sm:$0xff]
          %v396 = vld [vmem:[#allocation6 + $0x6d8] sm:$0xff]
          %v397 = vld [vmem:[#allocation6 + $0x6e0] sm:$0xff]
          %v398 = vld [vmem:[#allocation6 + $0x6e8] sm:$0xff]
          %v399 = vld [vmem:[#allocation6 + $0x6f0] sm:$0xff]
          %v400 = vld [vmem:[#allocation6 + $0x6f8] sm:$0xff]
          %v401 = vld [vmem:[#allocation6 + $0x700] sm:$0xff]
          %v402 = vld [vmem:[#allocation6 + $0x708] sm:$0xff]
          %v403 = vld [vmem:[#allocation6 + $0x710] sm:$0xff]
          %v404 = vld [vmem:[#allocation6 + $0x718] sm:$0xff]
          %v405 = vld [vmem:[#allocation6 + $0x720] sm:$0xff]
          %v406 = vld [vmem:[#allocation6 + $0x728] sm:$0xff]
          %v407 = vld [vmem:[#allocation6 + $0x730] sm:$0xff]
          %v408 = vld [vmem:[#allocation6 + $0x738] sm:$0xff]
          %v409 = vld [vmem:[#allocation6 + $0x740] sm:$0xff]
          %v410 = vld [vmem:[#allocation6 + $0x748] sm:$0xff]
          %v411 = vld [vmem:[#allocation6 + $0x750] sm:$0xff]
          %v412 = vld [vmem:[#allocation6 + $0x758] sm:$0xff]
          %v413 = vld [vmem:[#allocation6 + $0x760] sm:$0xff]
          %v414 = vld [vmem:[#allocation6 + $0x768] sm:$0xff]
          %v415 = vld [vmem:[#allocation6 + $0x770] sm:$0xff]
          %v416 = vld [vmem:[#allocation6 + $0x778] sm:$0xff]
          %v417 = vld [vmem:[#allocation6 + $0x780] sm:$0xff]
          %v418 = vld [vmem:[#allocation6 + $0x788] sm:$0xff]
          %v419 = vld [vmem:[#allocation6 + $0x790] sm:$0xff]
          %v420 = vld [vmem:[#allocation6 + $0x798] sm:$0xff]
          %v421 = vld [vmem:[#allocation6 + $0x7a0] sm:$0xff]
          %v422 = vld [vmem:[#allocation6 + $0x7a8] sm:$0xff]
          %v423 = vld [vmem:[#allocation6 + $0x7b0] sm:$0xff]
          %v424 = vld [vmem:[#allocation6 + $0x7b8] sm:$0xff]
          %v425 = vld [vmem:[#allocation6 + $0x7c0] sm:$0xff]
          %v426 = vld [vmem:[#allocation6 + $0x7c8] sm:$0xff]
          %v427 = vld [vmem:[#allocation6 + $0x7d0] sm:$0xff]
          %v428 = vld [vmem:[#allocation6 + $0x7d8] sm:$0xff]
          %v429 = vld [vmem:[#allocation6 + $0x7e0] sm:$0xff]
          %v430 = vld [vmem:[#allocation6 + $0x7e8] sm:$0xff]
          %v431 = vld [vmem:[#allocation6 + $0x7f0] sm:$0xff]
          %v432 = vld [vmem:[#allocation6 + $0x7f8] sm:$0xff]
          %v434 = vcombine.high %v176, %v176
          %436 = vmatprep.subr.mxu0 %v178
          %437 = vmatpush1.msra.mxu0 %v177
          %438 = vmatprep.subr.mxu0 %v186
          %439 = vmatpush1.msra.mxu0 %v185
          %440 = vmatprep.subr.mxu0 %v194
          %441 = vmatpush1.msra.mxu0 %v193
          %442 = vmatprep.subr.mxu0 %v202
          %443 = vmatpush1.msra.mxu0 %v201
          %444 = vmatprep.subr.mxu0 %v210
          %445 = vmatpush1.msra.mxu0 %v209
          %446 = vmatprep.subr.mxu0 %v218
          %447 = vmatpush1.msra.mxu0 %v217
          %448 = vmatprep.subr.mxu0 %v226
          %449 = vmatpush1.msra.mxu0 %v225
          %450 = vmatprep.subr.mxu0 %v234
          %451 = vmatpush1.msra.mxu0 %v233
          %452 = vmatprep.subr.mxu0 %v242
          %453 = vmatpush1.msra.mxu0 %v241
          %454 = vmatprep.subr.mxu0 %v250
          %455 = vmatpush1.msra.mxu0 %v249
          %456 = vmatprep.subr.mxu0 %v258
          %457 = vmatpush1.msra.mxu0 %v257
          %458 = vmatprep.subr.mxu0 %v266
          %459 = vmatpush1.msra.mxu0 %v265
          %460 = vmatprep.subr.mxu0 %v274
          %461 = vmatpush1.msra.mxu0 %v273
          %462 = vmatprep.subr.mxu0 %v282
          %463 = vmatpush1.msra.mxu0 %v281
          %464 = vmatprep.subr.mxu0 %v290
          %465 = vmatpush1.msra.mxu0 %v289
          %466 = vmatprep.subr.mxu0 %v298
          %467 = vmatpush1.msra.mxu0 %v297
          %468 = vmatprep.subr.mxu0 %v306
          %469 = vmatpush1.msra.mxu0 %v305
          %470 = vmatprep.subr.mxu0 %v314
          %471 = vmatpush1.msra.mxu0 %v313
          %472 = vmatprep.subr.mxu0 %v322
          %473 = vmatpush1.msra.mxu0 %v321
          %474 = vmatprep.subr.mxu0 %v330
          %475 = vmatpush1.msra.mxu0 %v329
          %476 = vmatprep.subr.mxu0 %v338
          %477 = vmatpush1.msra.mxu0 %v337
          %478 = vmatprep.subr.mxu0 %v346
          %479 = vmatpush1.msra.mxu0 %v345
          %480 = vmatprep.subr.mxu0 %v354
          %481 = vmatpush1.msra.mxu0 %v353
          %482 = vmatprep.subr.mxu0 %v362
          %483 = vmatpush1.msra.mxu0 %v361
          %484 = vmatprep.subr.mxu0 %v370
          %485 = vmatpush1.msra.mxu0 %v369
          %486 = vmatprep.subr.mxu0 %v378
          %487 = vmatpush1.msra.mxu0 %v377
          %488 = vmatprep.subr.mxu0 %v386
          %489 = vmatpush1.msra.mxu0 %v385
          %490 = vmatprep.subr.mxu0 %v394
          %491 = vmatpush1.msra.mxu0 %v393
          %492 = vmatprep.subr.mxu0 %v402
          %493 = vmatpush1.msra.mxu0 %v401
          %494 = vmatprep.subr.mxu0 %v410
          %495 = vmatpush1.msra.mxu0 %v409
          %496 = vmatprep.subr.mxu0 %v418
          %497 = vmatpush1.msra.mxu0 %v417
          %498 = vmatprep.subr.mxu0 %v426
          %499 = vmatpush1.msra.mxu0 %v425
          %500 = vmatprep.mubr.f32.mxu0 %v434
          %501 = vmatmul.mubr.f32.gmra.mrb[0].mxu0 %v176
          %v502 = vpop.f32.mrb[0].mxu0
          %v503 = vadd.f32 0.0, %v502
          %v504 = vpop.f32.mrb[0].mxu0
          %v505 = vadd.f32 0.0, %v504
          %506 = vdwg.mxu0
          %507 = vmatprep.subr.mxu0 %v180
          %508 = vmatpush1.msra.mxu0 %v179
          %509 = vmatprep.subr.mxu0 %v188
          %510 = vmatpush1.msra.mxu0 %v187
          %511 = vmatprep.subr.mxu0 %v196
          %512 = vmatpush1.msra.mxu0 %v195
          %513 = vmatprep.subr.mxu0 %v204
          %514 = vmatpush1.msra.mxu0 %v203
          %515 = vmatprep.subr.mxu0 %v212
          %516 = vmatpush1.msra.mxu0 %v211
          %517 = vmatprep.subr.mxu0 %v220
          %518 = vmatpush1.msra.mxu0 %v219
          %519 = vmatprep.subr.mxu0 %v228
          %520 = vmatpush1.msra.mxu0 %v227
          %521 = vmatprep.subr.mxu0 %v236
          %522 = vmatpush1.msra.mxu0 %v235
          %523 = vmatprep.subr.mxu0 %v244
          %524 = vmatpush1.msra.mxu0 %v243
          %525 = vmatprep.subr.mxu0 %v252
          %526 = vmatpush1.msra.mxu0 %v251
          %527 = vmatprep.subr.mxu0 %v260
          %528 = vmatpush1.msra.mxu0 %v259
          %529 = vmatprep.subr.mxu0 %v268
          %530 = vmatpush1.msra.mxu0 %v267
          %531 = vmatprep.subr.mxu0 %v276
          %532 = vmatpush1.msra.mxu0 %v275
          %533 = vmatprep.subr.mxu0 %v284
          %534 = vmatpush1.msra.mxu0 %v283
          %535 = vmatprep.subr.mxu0 %v292
          %536 = vmatpush1.msra.mxu0 %v291
          %537 = vmatprep.subr.mxu0 %v300
          %538 = vmatpush1.msra.mxu0 %v299
          %539 = vmatprep.subr.mxu0 %v308
          %540 = vmatpush1.msra.mxu0 %v307
          %541 = vmatprep.subr.mxu0 %v316
          %542 = vmatpush1.msra.mxu0 %v315
          %543 = vmatprep.subr.mxu0 %v324
          %544 = vmatpush1.msra.mxu0 %v323
          %545 = vmatprep.subr.mxu0 %v332
          %546 = vmatpush1.msra.mxu0 %v331
          %547 = vmatprep.subr.mxu0 %v340
          %548 = vmatpush1.msra.mxu0 %v339
          %549 = vmatprep.subr.mxu0 %v348
          %550 = vmatpush1.msra.mxu0 %v347
          %551 = vmatprep.subr.mxu0 %v356
          %552 = vmatpush1.msra.mxu0 %v355
          %553 = vmatprep.subr.mxu0 %v364
          %554 = vmatpush1.msra.mxu0 %v363
          %555 = vmatprep.subr.mxu0 %v372
          %556 = vmatpush1.msra.mxu0 %v371
          %557 = vmatprep.subr.mxu0 %v380
          %558 = vmatpush1.msra.mxu0 %v379
          %559 = vmatprep.subr.mxu0 %v388
          %560 = vmatpush1.msra.mxu0 %v387
          %561 = vmatprep.subr.mxu0 %v396
          %562 = vmatpush1.msra.mxu0 %v395
          %563 = vmatprep.subr.mxu0 %v404
          %564 = vmatpush1.msra.mxu0 %v403
          %565 = vmatprep.subr.mxu0 %v412
          %566 = vmatpush1.msra.mxu0 %v411
          %567 = vmatprep.subr.mxu0 %v420
          %568 = vmatpush1.msra.mxu0 %v419
          %569 = vmatprep.subr.mxu0 %v428
          %570 = vmatpush1.msra.mxu0 %v427
          %571 = vmatprep.mubr.f32.mxu0 %v434
          %572 = vmatmul.mubr.f32.gmra.mrb[0].mxu0 %v176
          %v573 = vpop.f32.mrb[0].mxu0
          %v574 = vadd.f32 0.0, %v573
          %v575 = vpop.f32.mrb[0].mxu0
          %v576 = vadd.f32 0.0, %v575
          %577 = vdwg.mxu0
          %578 = vmatprep.subr.mxu0 %v182
          %579 = vmatpush1.msra.mxu0 %v181
          %580 = vmatprep.subr.mxu0 %v190
          %581 = vmatpush1.msra.mxu0 %v189
          %582 = vmatprep.subr.mxu0 %v198
          %583 = vmatpush1.msra.mxu0 %v197
          %584 = vmatprep.subr.mxu0 %v206
          %585 = vmatpush1.msra.mxu0 %v205
          %586 = vmatprep.subr.mxu0 %v214
          %587 = vmatpush1.msra.mxu0 %v213
          %588 = vmatprep.subr.mxu0 %v222
          %589 = vmatpush1.msra.mxu0 %v221
          %590 = vmatprep.subr.mxu0 %v230
          %591 = vmatpush1.msra.mxu0 %v229
          %592 = vmatprep.subr.mxu0 %v238
          %593 = vmatpush1.msra.mxu0 %v237
          %594 = vmatprep.subr.mxu0 %v246
          %595 = vmatpush1.msra.mxu0 %v245
          %596 = vmatprep.subr.mxu0 %v254
          %597 = vmatpush1.msra.mxu0 %v253
          %598 = vmatprep.subr.mxu0 %v262
          %599 = vmatpush1.msra.mxu0 %v261
          %600 = vmatprep.subr.mxu0 %v270
          %601 = vmatpush1.msra.mxu0 %v269
          %602 = vmatprep.subr.mxu0 %v278
          %603 = vmatpush1.msra.mxu0 %v277
          %604 = vmatprep.subr.mxu0 %v286
          %605 = vmatpush1.msra.mxu0 %v285
          %606 = vmatprep.subr.mxu0 %v294
          %607 = vmatpush1.msra.mxu0 %v293
          %608 = vmatprep.subr.mxu0 %v302
          %609 = vmatpush1.msra.mxu0 %v301
          %610 = vmatprep.subr.mxu0 %v310
          %611 = vmatpush1.msra.mxu0 %v309
          %612 = vmatprep.subr.mxu0 %v318
          %613 = vmatpush1.msra.mxu0 %v317
          %614 = vmatprep.subr.mxu0 %v326
          %615 = vmatpush1.msra.mxu0 %v325
          %616 = vmatprep.subr.mxu0 %v334
          %617 = vmatpush1.msra.mxu0 %v333
          %618 = vmatprep.subr.mxu0 %v342
          %619 = vmatpush1.msra.mxu0 %v341
          %620 = vmatprep.subr.mxu0 %v350
          %621 = vmatpush1.msra.mxu0 %v349
          %622 = vmatprep.subr.mxu0 %v358
          %623 = vmatpush1.msra.mxu0 %v357
          %624 = vmatprep.subr.mxu0 %v366
          %625 = vmatpush1.msra.mxu0 %v365
          %626 = vmatprep.subr.mxu0 %v374
          %627 = vmatpush1.msra.mxu0 %v373
          %628 = vmatprep.subr.mxu0 %v382
          %629 = vmatpush1.msra.mxu0 %v381
          %630 = vmatprep.subr.mxu0 %v390
          %631 = vmatpush1.msra.mxu0 %v389
          %632 = vmatprep.subr.mxu0 %v398
          %633 = vmatpush1.msra.mxu0 %v397
          %634 = vmatprep.subr.mxu0 %v406
          %635 = vmatpush1.msra.mxu0 %v405
          %636 = vmatprep.subr.mxu0 %v414
          %637 = vmatpush1.msra.mxu0 %v413
          %638 = vmatprep.subr.mxu0 %v422
          %639 = vmatpush1.msra.mxu0 %v421
          %640 = vmatprep.subr.mxu0 %v430
          %641 = vmatpush1.msra.mxu0 %v429
          %642 = vmatprep.mubr.f32.mxu0 %v434
          %643 = vmatmul.mubr.f32.gmra.mrb[0].mxu0 %v176
          %v644 = vpop.f32.mrb[0].mxu0
          %v645 = vadd.f32 0.0, %v644
          %v646 = vpop.f32.mrb[0].mxu0
          %v647 = vadd.f32 0.0, %v646
          %648 = vdwg.mxu0
          %649 = vmatprep.subr.mxu0 %v184
          %650 = vmatpush1.msra.mxu0 %v183
          %651 = vmatprep.subr.mxu0 %v192
          %652 = vmatpush1.msra.mxu0 %v191
          %653 = vmatprep.subr.mxu0 %v200
          %654 = vmatpush1.msra.mxu0 %v199
          %655 = vmatprep.subr.mxu0 %v208
          %656 = vmatpush1.msra.mxu0 %v207
          %657 = vmatprep.subr.mxu0 %v216
          %658 = vmatpush1.msra.mxu0 %v215
          %659 = vmatprep.subr.mxu0 %v224
          %660 = vmatpush1.msra.mxu0 %v223
          %661 = vmatprep.subr.mxu0 %v232
          %662 = vmatpush1.msra.mxu0 %v231
          %663 = vmatprep.subr.mxu0 %v240
          %664 = vmatpush1.msra.mxu0 %v239
          %665 = vmatprep.subr.mxu0 %v248
          %666 = vmatpush1.msra.mxu0 %v247
          %667 = vmatprep.subr.mxu0 %v256
          %668 = vmatpush1.msra.mxu0 %v255
          %669 = vmatprep.subr.mxu0 %v264
          %670 = vmatpush1.msra.mxu0 %v263
          %671 = vmatprep.subr.mxu0 %v272
          %672 = vmatpush1.msra.mxu0 %v271
          %673 = vmatprep.subr.mxu0 %v280
          %674 = vmatpush1.msra.mxu0 %v279
          %675 = vmatprep.subr.mxu0 %v288
          %676 = vmatpush1.msra.mxu0 %v287
          %677 = vmatprep.subr.mxu0 %v296
          %678 = vmatpush1.msra.mxu0 %v295
          %679 = vmatprep.subr.mxu0 %v304
          %680 = vmatpush1.msra.mxu0 %v303
          %681 = vmatprep.subr.mxu0 %v312
          %682 = vmatpush1.msra.mxu0 %v311
          %683 = vmatprep.subr.mxu0 %v320
          %684 = vmatpush1.msra.mxu0 %v319
          %685 = vmatprep.subr.mxu0 %v328
          %686 = vmatpush1.msra.mxu0 %v327
          %687 = vmatprep.subr.mxu0 %v336
          %688 = vmatpush1.msra.mxu0 %v335
          %689 = vmatprep.subr.mxu0 %v344
          %690 = vmatpush1.msra.mxu0 %v343
          %691 = vmatprep.subr.mxu0 %v352
          %692 = vmatpush1.msra.mxu0 %v351
          %693 = vmatprep.subr.mxu0 %v360
          %694 = vmatpush1.msra.mxu0 %v359
          %695 = vmatprep.subr.mxu0 %v368
          %696 = vmatpush1.msra.mxu0 %v367
          %697 = vmatprep.subr.mxu0 %v376
          %698 = vmatpush1.msra.mxu0 %v375
          %699 = vmatprep.subr.mxu0 %v384
          %700 = vmatpush1.msra.mxu0 %v383
          %701 = vmatprep.subr.mxu0 %v392
          %702 = vmatpush1.msra.mxu0 %v391
          %703 = vmatprep.subr.mxu0 %v400
          %704 = vmatpush1.msra.mxu0 %v399
          %705 = vmatprep.subr.mxu0 %v408
          %706 = vmatpush1.msra.mxu0 %v407
          %707 = vmatprep.subr.mxu0 %v416
          %708 = vmatpush1.msra.mxu0 %v415
          %709 = vmatprep.subr.mxu0 %v424
          %710 = vmatpush1.msra.mxu0 %v423
          %711 = vmatprep.subr.mxu0 %v432
          %712 = vmatpush1.msra.mxu0 %v431
          %713 = vmatprep.mubr.f32.mxu0 %v434
          %714 = vmatmul.mubr.f32.gmra.mrb[0].mxu0 %v176
          %v715 = vpop.f32.mrb[0].mxu0
          %v716 = vadd.f32 0.0, %v715
          %v717 = vpop.f32.mrb[0].mxu0
          %v718 = vadd.f32 0.0, %v717
          %719 = vdwg.mxu0
          %v722 = vcombine.low %v503, %v505
          %724 = vst [vmem:[#allocation2] sm:$0xff] %v722
          %v727 = vcombine.low %v574, %v576
          %s729 = scalar_lea.vmem [#allocation2], 8
          %730 = vst [vmem:[%s729] sm:$0xff] %v727
          %v733 = vcombine.low %v645, %v647
          %s735 = scalar_lea.vmem [#allocation2], 16
          %736 = vst [vmem:[%s735] sm:$0xff] %v733
          %v739 = vcombine.low %v716, %v718
          %s741 = scalar_lea.vmem [#allocation2], 24
          %742 = vst [vmem:[%s741] sm:$0xff] %v739
          %743 = vst [vmem:[%s171] sm:$0xff] %v176
        $region40: #{tpu_custom_call.1} parent=27 // pred_fallthru
          _
        %p744 = scmp.gt.s32.totalorder %s23, 0
        // Predicated region
        $region41: #{tpu_custom_call.1} parent=27 // pred_check
          %p745 = pneg %p744
        $region42: #{tpu_custom_call.1} parent=27 // pred_check_branch
          %747 = sbr.rel (%p745) target = $region44
        $region43: #{tpu_custom_call.1} parent=27 // pred_region
          %s748 = ssub.s32 %s23, 1
          %p749 = scmp.lt.s32.totalorder %s748, 0
          %s750 = ssub.s32 0, %s748
          %s751 = scalar_select %p749, %s750, %s748
          %s752 = sand.u32 %s751, 3
          %s753 = ssub.s32 0, %s752
          %s754 = scalar_select %p749, %s753, %s752
          %p755 = scmp.ne.s32.totalorder %s754, 0
          %p756 = scmp.lt.s32.totalorder %s754, 0
          %p757 = pnand %p756, %p755
          %p758 = pneg %p757
          %s759 = sadd.s32 %s754, 4
          %s760 = scalar_select %p758, %s759, %s754
          %s761 = smul.u32 %s760, 2
          %s762 = smul.addr %s761, 4
          %s763 = scalar_lea.vmem [#allocation2], %s762
          %v764 = vld [vmem:[%s763] sm:$0xff]
          %765 = vst [vmem:[%s171] sm:$0xff] %v764
        $region44: #{tpu_custom_call.1} parent=27 // pred_fallthru
          _
        %s766 = sand.u32 %s87, 1
        %s767 = scalar_lea.sflag [#allocation5], %s766
        %s768 = sand.u32 %s87, 1
        %s769 = smul.addr %s768, 8
        %s770 = scalar_lea.vmem [#allocation8], %s769
        // Predicated region
        $region45: #{tpu_custom_call.1} parent=27 // pred_check
          %p771 = pneg %p97
        $region46: #{tpu_custom_call.1} parent=27 // pred_check_branch
          %773 = sbr.rel (%p771) target = $region48
        $region47: #{tpu_custom_call.1} parent=27 // pred_region
          %s775 = ssub.s32 128, 128
          %776 = vsyncadd %s767, %s775
          %s777 = smul.addr %s22, 2
          %s778 = smul.addr %s23, 2
          %s779 = sadd.s32 %s777, %s778
          %s780 = smul.addr %s779, 64
          %s781 = scalar_lea.hbm %s2, %s780
          %s783 = sshll.u32 %s770, 4
          %s784 = int_to_ptr.vmem [resolvable:$true] %s783
          %786 = dma.vmem_to_hbm [thread:$0]  %s784, 128, %s781, %s767
        $region48: #{tpu_custom_call.1} parent=27 // pred_fallthru
          _
      $region28: #{tpu_custom_call.1} parent=5 // pred_fallthru
        _
      %p787 = scmp.le.s32.totalorder 2, %s13
      // Predicated region
      $region49: #{tpu_custom_call.1} parent=5 // pred_check
        %p788 = pneg %p787
      $region50: #{tpu_custom_call.1} parent=5 // pred_check_branch
        %790 = sbr.rel (%p788) target = $region52
      $region51: #{tpu_custom_call.1} parent=5 // pred_region
        %s791 = ssub.s32 %s13, 2
        // Predicated region
        $region53: #{tpu_custom_call.1} parent=51 // pred_check
          %p792 = pneg %p103
        $region54: #{tpu_custom_call.1} parent=51 // pred_check_branch
          %794 = sbr.rel (%p792) target = $region56
        $region55: #{tpu_custom_call.1} parent=51 // pred_region
          %s795 = sand.u32 %s88, 1
          %s796 = scalar_lea.sflag [#allocation5], %s795
          %s797 = sand.u32 %s88, 1
          %s798 = smul.addr %s797, 8
          %s799 = scalar_lea.vmem [#allocation8], %s798
          %800 = dma.done %s796, 128
        $region56: #{tpu_custom_call.1} parent=51 // pred_fallthru
          _
      $region52: #{tpu_custom_call.1} parent=5 // pred_fallthru
        _
    $region6: #{tpu_custom_call.1} parent=1 // loop_footer
      %s17 = sadd.s32 1, %s13
    $region7: #{tpu_custom_call.1} parent=1 // loop_footer_branch
      %12 = sbr.rel target = $region3
    $region8: #{tpu_custom_call.1} parent=1 // loop_exit
      _
    %801 = vsyncpa [#allocation4], 1
    %s802 = scalar_lea.sflag [#allocation4], 1
    %803 = vsyncpa %s802, 1
    %804 = vsyncpa [#allocation7], 1
    %805 = vsyncpa [#allocation5], 1
    %s806 = scalar_lea.sflag [#allocation5], 1
    %807 = vsyncpa %s806, 1

</llo_original>
